<compile_context>
chip_gen: v7x
topology: tpu7x:2x2x1
jax: 0.10.0
libtpu: 0.0.40
codegen_flags: <defaults>
</compile_context>

<pallas_src>
import functools

import jax
import jax.numpy as jnp
from jax.experimental import pallas as pl
from jax.experimental.pallas import tpu as pltpu

SUBLANE = 8
_MIN_SPLIT = 1024                 # above this many rows, force >=2 grid steps (v7x megacore)
_VMEM_LIMIT = 64 * 1024 * 1024    # covers tile_b up to ~4096 f32 with ample headroom


def _round_up(n, m):
    return ((n + m - 1) // m) * m


def mlp_kernel(x_ref, w1_ref, b1_ref, w2_ref, b2_ref, w3_ref, b3_ref, o_ref):
    compute_dtype = w1_ref.dtype
    # In-kernel cast of the batch tile (VPU op, hidden under MXU/DMA) -- avoids
    # a wrapper-side pad+astype pass over x in HBM.
    x = x_ref[...].astype(compute_dtype)
    # layer 1: Linear + ReLU (MXU matmul, f32 accumulation)
    h1 = jnp.dot(x, w1_ref[...], preferred_element_type=jnp.float32)
    h1 = jnp.maximum(h1 + b1_ref[...], 0.0).astype(compute_dtype)
    # layer 2: Linear + ReLU
    h2 = jnp.dot(h1, w2_ref[...], preferred_element_type=jnp.float32)
    h2 = jnp.maximum(h2 + b2_ref[...], 0.0).astype(compute_dtype)
    # output layer: Linear (no activation)
    out = jnp.dot(h2, w3_ref[...], preferred_element_type=jnp.float32)
    o_ref[...] = (out + b3_ref[...]).astype(o_ref.dtype)


def prepare_params(params, compute_dtype=jnp.bfloat16):
    """One-time cast of weights to the MXU compute dtype (biases stay f32).

    Hoisted out of the per-call path so repeated small-batch calls don't pay
    ~6 extra convert XLA ops per invocation.
    """
    return {
        "w1": params["w1"].astype(compute_dtype),
        "b1": params["b1"].reshape(1, -1).astype(jnp.float32),
        "w2": params["w2"].astype(compute_dtype),
        "b2": params["b2"].reshape(1, -1).astype(jnp.float32),
        "w3": params["w3"].astype(compute_dtype),
        "b3": params["b3"].reshape(1, -1).astype(jnp.float32),
    }


@functools.partial(jax.jit, static_argnames=("tile_b",))
def mlp_forward(x, params, *, tile_b=2048):
    """x: [B, input_dim] f32 ; params: output of prepare_params()."""
    w1, b1, w2, b2, w3, b3 = (params["w1"], params["b1"], params["w2"],
                              params["b2"], params["w3"], params["b3"])
    B, in_dim = x.shape
    hidden = w1.shape[1]
    out_dim = w3.shape[1]

    # --- batch tile selection -------------------------------------------------
    # tb is a multiple of 8 (sublane).  The ragged last tile is handled by
    # Pallas boundary masking (OOB input rows are garbage but row-independent;
    # OOB output rows are discarded), so no wrapper-side padding of B.
    # Once the batch is big enough, keep >=2 grid steps so v7x's two
    # TensorCores both get work; harmless on single-TC v5e/v6e.
    b8 = _round_up(max(B, 1), SUBLANE)
    if b8 <= tile_b:
        tb = b8 if b8 <= _MIN_SPLIT else _round_up(pl.cdiv(b8, 2), SUBLANE)
    else:
        tb = tile_b
    grid = (pl.cdiv(B, tb),)

    dsize = jnp.dtype(w1.dtype).itemsize
    flops = 2 * B * (in_dim * hidden + hidden * hidden + hidden * out_dim)
    bytes_accessed = (B * in_dim * x.dtype.itemsize + B * out_dim * 4
                      + (in_dim * hidden + hidden * hidden + hidden * out_dim) * dsize
                      + (2 * hidden + out_dim) * 4)

    resident = lambda i: (0, 0)  # weights/biases: same block every step -> stay VMEM-resident
    return pl.pallas_call(
        mlp_kernel,
        out_shape=jax.ShapeDtypeStruct((B, out_dim), jnp.float32),
        grid=grid,
        in_specs=[
            pl.BlockSpec((tb, in_dim), lambda i: (i, 0)),   # x tile (unpadded feature dim)
            pl.BlockSpec((in_dim, hidden), resident),        # w1 (full-array block)
            pl.BlockSpec((1, hidden), resident),              # b1
            pl.BlockSpec((hidden, hidden), resident),          # w2
            pl.BlockSpec((1, hidden), resident),               # b2
            pl.BlockSpec((hidden, out_dim), resident),          # w3
            pl.BlockSpec((1, out_dim), resident),               # b3
        ],
        out_specs=pl.BlockSpec((tb, out_dim), lambda i: (i, 0)),
        compiler_params=pltpu.CompilerParams(
            dimension_semantics=("parallel",),
            vmem_limit_bytes=_VMEM_LIMIT),
        cost_estimate=pl.CostEstimate(
            flops=flops, transcendentals=0, bytes_accessed=bytes_accessed),
    )(x, w1, b1, w2, b2, w3, b3)


def init_mlp_params(key, input_dim, output_dim, hidden_dim=256):
    """Orthogonal weights (gain=1), zero biases -- matches MLP._init_weights."""
    k1, k2, k3 = jax.random.split(key, 3)
    ortho = jax.nn.initializers.orthogonal(scale=1.0)
    # stored as [in, out] (transpose of PyTorch layout); orthogonality preserved.
    return {
        "w1": ortho(k1, (input_dim, hidden_dim), jnp.float32),
        "b1": jnp.zeros((1, hidden_dim), jnp.float32),
        "w2": ortho(k2, (hidden_dim, hidden_dim), jnp.float32),
        "b2": jnp.zeros((1, hidden_dim), jnp.float32),
        "w3": ortho(k3, (hidden_dim, output_dim), jnp.float32),
        "b3": jnp.zeros((1, output_dim), jnp.float32),
    }


if __name__ == "__main__":
    key = jax.random.PRNGKey(0)
    kx, kp = jax.random.split(key)

    batch, input_dim, output_dim = 2, 8, 4
    x = jax.random.normal(kx, (batch, input_dim), dtype=jnp.float32)
    params = init_mlp_params(kp, input_dim, output_dim)

    # pure-JAX reference
    def ref(x, p):
        h1 = jnp.maximum(x @ p["w1"] + p["b1"], 0.0)
        h2 = jnp.maximum(h1 @ p["w2"] + p["b2"], 0.0)
        return h2 @ p["w3"] + p["b3"]

    expected = ref(x, params)

    # default bf16 MXU path (v6e/v7x native) -- inter-layer activations are
    # truncated to bf16, accumulation stays f32 -> looser tolerance.
    p_bf16 = prepare_params(params)
    out_bf16 = jax.block_until_ready(mlp_forward(x, p_bf16))
    assert out_bf16.shape == (batch, output_dim)
    assert jnp.allclose(out_bf16, expected, atol=5e-2, rtol=5e-2)

    # f32 path (tight check)
    p_f32 = prepare_params(params, compute_dtype=jnp.float32)
    out_f32 = jax.block_until_ready(mlp_forward(x, p_f32))
    assert out_f32.shape == (batch, output_dim)
    assert jnp.allclose(out_f32, expected, atol=1e-5, rtol=1e-5)

    # larger, non-tile-divisible batch: exercises a >=2-step grid and the
    # ragged last tile (boundary masking), with no wrapper-side padding of B.
    xb = jax.random.normal(kx, (3000, input_dim), dtype=jnp.float32)
    out_big = jax.block_until_ready(mlp_forward(xb, p_f32))
    assert out_big.shape == (3000, output_dim)
    assert jnp.allclose(out_big, ref(xb, params), atol=1e-4, rtol=1e-4)

    # mid-size batch: exercises the "split into 2 tiles for megacore" branch.
    xm = jax.random.normal(kx, (1500, input_dim), dtype=jnp.float32)
    out_mid = jax.block_until_ready(mlp_forward(xm, p_f32))
    assert out_mid.shape == (1500, output_dim)
    assert jnp.allclose(out_mid, ref(xm, params), atol=1e-4, rtol=1e-4)

    print("KERNEL_OK")
</pallas_src>

<mosaic_0001>
module attributes {stable_mosaic.version = 11 : i64} {
  func.func @mlp_kernel(%arg0: i32, %arg1: memref<8x8xf32, #tpu.memory_space<vmem>>, %arg2: memref<8x256xbf16, #tpu.memory_space<vmem>>, %arg3: memref<1x256xf32, #tpu.memory_space<vmem>>, %arg4: memref<256x256xbf16, #tpu.memory_space<vmem>>, %arg5: memref<1x256xf32, #tpu.memory_space<vmem>>, %arg6: memref<256x4xbf16, #tpu.memory_space<vmem>>, %arg7: memref<1x4xf32, #tpu.memory_space<vmem>>, %arg8: memref<8x4xf32, #tpu.memory_space<vmem>>) attributes {dimension_semantics = [#tpu.dimension_semantics<parallel>], iteration_bounds = array<i64: 1>, scalar_prefetch = 0 : i64, scratch_operands = 0 : i64, tpu.core_type = #tpu.core_type<tc>, window_params = [{transform_indices = @transform_0, window_bounds = array<i64: 8, 8>}, {pipeline_mode = #tpu.pipeline_mode<synchronous>, transform_indices = @transform_1, window_bounds = array<i64: 8, 256>}, {pipeline_mode = #tpu.pipeline_mode<synchronous>, transform_indices = @transform_2, window_bounds = array<i64: 1, 256>}, {pipeline_mode = #tpu.pipeline_mode<synchronous>, transform_indices = @transform_3, window_bounds = array<i64: 256, 256>}, {pipeline_mode = #tpu.pipeline_mode<synchronous>, transform_indices = @transform_4, window_bounds = array<i64: 1, 256>}, {pipeline_mode = #tpu.pipeline_mode<synchronous>, transform_indices = @transform_5, window_bounds = array<i64: 256, 4>}, {pipeline_mode = #tpu.pipeline_mode<synchronous>, transform_indices = @transform_6, window_bounds = array<i64: 1, 4>}, {transform_indices = @transform_7, window_bounds = array<i64: 8, 4>}]} {
    %c0 = arith.constant 0 : index
    %c0_0 = arith.constant 0 : index
    %0 = vector.load %arg1[%c0, %c0_0] : memref<8x8xf32, #tpu.memory_space<vmem>>, vector<8x8xf32>
    %1 = arith.truncf %0 : vector<8x8xf32> to vector<8x8xbf16>
    %c0_1 = arith.constant 0 : index
    %c0_2 = arith.constant 0 : index
    %2 = vector.load %arg2[%c0_1, %c0_2] : memref<8x256xbf16, #tpu.memory_space<vmem>>, vector<8x256xbf16>
    %cst = arith.constant dense<0.000000e+00> : vector<8x256xf32>
    %3 = tpu.matmul %1, %2, %cst {dimension_numbers = #tpu.dot_dimension_numbers<[1], [0], [0], [1], [0, 0, 1, 1], [], []>} : vector<8x8xbf16>, vector<8x256xbf16>, vector<8x256xf32> -> vector<8x256xf32>
    %c0_3 = arith.constant 0 : index
    %c0_4 = arith.constant 0 : index
    %4 = vector.load %arg3[%c0_3, %c0_4] : memref<1x256xf32, #tpu.memory_space<vmem>>, vector<1x256xf32>
    %5 = vector.broadcast %4 : vector<1x256xf32> to vector<8x256xf32>
    %6 = arith.addf %3, %5 : vector<8x256xf32>
    %cst_5 = arith.constant 0.000000e+00 : f32
    %7 = vector.broadcast %cst_5 : f32 to vector<8x256xf32>
    %8 = arith.maximumf %6, %7 : vector<8x256xf32>
    %9 = arith.truncf %8 : vector<8x256xf32> to vector<8x256xbf16>
    %c0_6 = arith.constant 0 : index
    %c0_7 = arith.constant 0 : index
    %10 = vector.load %arg4[%c0_6, %c0_7] : memref<256x256xbf16, #tpu.memory_space<vmem>>, vector<256x256xbf16>
    %cst_8 = arith.constant dense<0.000000e+00> : vector<8x256xf32>
    %11 = tpu.matmul %9, %10, %cst_8 {dimension_numbers = #tpu.dot_dimension_numbers<[1], [0], [0], [1], [0, 0, 1, 1], [], []>} : vector<8x256xbf16>, vector<256x256xbf16>, vector<8x256xf32> -> vector<8x256xf32>
    %c0_9 = arith.constant 0 : index
    %c0_10 = arith.constant 0 : index
    %12 = vector.load %arg5[%c0_9, %c0_10] : memref<1x256xf32, #tpu.memory_space<vmem>>, vector<1x256xf32>
    %13 = vector.broadcast %12 : vector<1x256xf32> to vector<8x256xf32>
    %14 = arith.addf %11, %13 : vector<8x256xf32>
    %cst_11 = arith.constant 0.000000e+00 : f32
    %15 = vector.broadcast %cst_11 : f32 to vector<8x256xf32>
    %16 = arith.maximumf %14, %15 : vector<8x256xf32>
    %17 = arith.truncf %16 : vector<8x256xf32> to vector<8x256xbf16>
    %c0_12 = arith.constant 0 : index
    %c0_13 = arith.constant 0 : index
    %18 = vector.load %arg6[%c0_12, %c0_13] : memref<256x4xbf16, #tpu.memory_space<vmem>>, vector<256x4xbf16>
    %cst_14 = arith.constant dense<0.000000e+00> : vector<8x4xf32>
    %19 = tpu.matmul %17, %18, %cst_14 {dimension_numbers = #tpu.dot_dimension_numbers<[1], [0], [0], [1], [0, 0, 1, 1], [], []>} : vector<8x256xbf16>, vector<256x4xbf16>, vector<8x4xf32> -> vector<8x4xf32>
    %c0_15 = arith.constant 0 : index
    %c0_16 = arith.constant 0 : index
    %20 = vector.load %arg7[%c0_15, %c0_16] : memref<1x4xf32, #tpu.memory_space<vmem>>, vector<1x4xf32>
    %21 = vector.broadcast %20 : vector<1x4xf32> to vector<8x4xf32>
    %22 = arith.addf %19, %21 : vector<8x4xf32>
    %c0_17 = arith.constant 0 : index
    %c0_18 = arith.constant 0 : index
    %23 = vector.load %arg8[%c0_17, %c0_18] : memref<8x4xf32, #tpu.memory_space<vmem>>, vector<8x4xf32>
    tpu.vector_store %arg8[%c0_17, %c0_18], %22 {strides = array<i32>} : memref<8x4xf32, #tpu.memory_space<vmem>>, vector<8x4xf32>,
    return
  }
  func.func @transform_0(%arg0: i32) -> (i32, i32) {
    %c0_i32 = arith.constant 0 : i32
    %c0_i32_0 = arith.constant 0 : i32
    return %arg0, %c0_i32 : i32, i32
  }
  func.func @transform_1(%arg0: i32) -> (i32, i32) {
    %c0_i32 = arith.constant 0 : i32
    %c0_i32_0 = arith.constant 0 : i32
    %c0_i32_1 = arith.constant 0 : i32
    return %c0_i32, %c0_i32_0 : i32, i32
  }
  func.func @transform_2(%arg0: i32) -> (i32, i32) {
    %c0_i32 = arith.constant 0 : i32
    %c0_i32_0 = arith.constant 0 : i32
    %c0_i32_1 = arith.constant 0 : i32
    return %c0_i32, %c0_i32_0 : i32, i32
  }
  func.func @transform_3(%arg0: i32) -> (i32, i32) {
    %c0_i32 = arith.constant 0 : i32
    %c0_i32_0 = arith.constant 0 : i32
    %c0_i32_1 = arith.constant 0 : i32
    return %c0_i32, %c0_i32_0 : i32, i32
  }
  func.func @transform_4(%arg0: i32) -> (i32, i32) {
    %c0_i32 = arith.constant 0 : i32
    %c0_i32_0 = arith.constant 0 : i32
    %c0_i32_1 = arith.constant 0 : i32
    return %c0_i32, %c0_i32_0 : i32, i32
  }
  func.func @transform_5(%arg0: i32) -> (i32, i32) {
    %c0_i32 = arith.constant 0 : i32
    %c0_i32_0 = arith.constant 0 : i32
    %c0_i32_1 = arith.constant 0 : i32
    return %c0_i32, %c0_i32_0 : i32, i32
  }
  func.func @transform_6(%arg0: i32) -> (i32, i32) {
    %c0_i32 = arith.constant 0 : i32
    %c0_i32_0 = arith.constant 0 : i32
    %c0_i32_1 = arith.constant 0 : i32
    return %c0_i32, %c0_i32_0 : i32, i32
  }
  func.func @transform_7(%arg0: i32) -> (i32, i32) {
    %c0_i32 = arith.constant 0 : i32
    %c0_i32_0 = arith.constant 0 : i32
    return %arg0, %c0_i32 : i32, i32
  }
}

</mosaic_0001>

<llo_original>
// kernel: mlp_forward.1
$region0: #{mlp_forward.1}
  #allocation0 [shape = 'u32[]', space=smem, size = 0x4, offset = 0x4, fixed_abs, tag = 'smem constant byte address 0x4 - core index']
  #allocation1 [shape = 'u32[144,128]{1,0:T(1,128)}', space=vmem, size = 0x12000, scoped, tag = 'internal scratch']
  %s0 = inlined_call_operand.hbm [shape: f32[2,8], index: 0, kind: input, shape index: {}]
  %s1 = inlined_call_operand.hbm [shape: bf16[8,256], index: 1, kind: input, shape index: {}]
  %s2 = inlined_call_operand.hbm [shape: f32[1,256], index: 2, kind: input, shape index: {}]
  %s3 = inlined_call_operand.hbm [shape: bf16[256,256], index: 3, kind: input, shape index: {}]
  %s4 = inlined_call_operand.hbm [shape: f32[1,256], index: 4, kind: input, shape index: {}]
  %s5 = inlined_call_operand.hbm [shape: bf16[256,4], index: 5, kind: input, shape index: {}]
  %s6 = inlined_call_operand.hbm [shape: f32[1,4], index: 6, kind: input, shape index: {}]
  %s7 = inlined_call_operand.hbm [shape: f32[2,4], index: 7, kind: output, shape index: {}]
  %s8 = sld [smem:[#allocation0]]
  $region66: #{mlp_forward.1} parent=0
    _
  %s10 = ssub.s32 1, %s8
  %s11 = scalar_select 0, %s10, %s8
  $region1: #{mlp_forward.1} parent=0
    #allocation2 [shape = 'u8[4096]{0}', space=vmem, size = 0x1000, scoped, tag = 'input window, operand 0, single buffered']
    #allocation3 [shape = 's32[1]{0}', space=sflag, size = 0x4, scoped, tag = 'scoped memory for mlp_forward.1']
    #allocation4 [shape = 's32[1]{0}', space=sflag, size = 0x4, scoped, tag = 'scoped memory for mlp_forward.1']
    #allocation5 [shape = 'u8[4096]{0}', space=vmem, size = 0x1000, scoped, tag = 'input window, operand 1, single buffered']
    #allocation6 [shape = 's32[1]{0}', space=sflag, size = 0x4, scoped, tag = 'scoped memory for mlp_forward.1']
    #allocation7 [shape = 'u8[1024]{0}', space=vmem, size = 0x400, scoped, tag = 'input window, operand 2, single buffered']
    #allocation8 [shape = 'u8[131072]{0}', space=vmem, size = 0x20000, scoped, tag = 'input window, operand 3, single buffered']
    #allocation9 [shape = 's32[1]{0}', space=sflag, size = 0x4, scoped, tag = 'scoped memory for mlp_forward.1']
    #allocation10 [shape = 'u8[1024]{0}', space=vmem, size = 0x400, scoped, tag = 'input window, operand 4, single buffered']
    #allocation11 [shape = 'u8[65536]{0}', space=vmem, size = 0x10000, scoped, tag = 'input window, operand 5, single buffered']
    #allocation12 [shape = 's32[1]{0}', space=sflag, size = 0x4, scoped, tag = 'scoped memory for mlp_forward.1']
    #allocation13 [shape = 'u8[512]{0}', space=vmem, size = 0x400, scoped, tag = 'input window, operand 6, single buffered']
    #allocation14 [shape = 'u8[4096]{0}', space=vmem, size = 0x1000, scoped, tag = 'output window, operand 0, single buffered']
    %12 = vsyncpa [#allocation3], 0
    %13 = vsyncpa [#allocation6], 0
    %14 = vsyncpa [#allocation9], 0
    %15 = vsyncpa [#allocation12], 0
    %16 = vsyncpa [#allocation4], 0
    // Predicated region
    $region2: #{mlp_forward.1} parent=1 // pred_check
      _
    $region3: #{mlp_forward.1} parent=1 // pred_check_branch
      %18 = sbr.rel (0) target = $region5
    $region4: #{mlp_forward.1} parent=1 // pred_region
      %s20 = ssub.s32 128, 32
      %21 = vsyncadd [#allocation3], %s20
      %s22 = sshll.u32 [#allocation2], 4
      %s23 = int_to_ptr.vmem [resolvable:$true] %s22
      %28 = dma.hbm_to_vmem [thread:$0]  %s0, 32, %s23, [#allocation3], 32, 32, 2
    $region5: #{mlp_forward.1} parent=1 // pred_fallthru
      _
    // Predicated region
    $region6: #{mlp_forward.1} parent=1 // pred_check
      _
    $region7: #{mlp_forward.1} parent=1 // pred_check_branch
      %30 = sbr.rel (0) target = $region9
    $region8: #{mlp_forward.1} parent=1 // pred_region
      %s32 = ssub.s32 128, 128
      %33 = vsyncadd [#allocation6], %s32
      %s35 = sshll.u32 [#allocation5], 4
      %s36 = int_to_ptr.vmem [resolvable:$true] %s35
      %38 = dma.hbm_to_vmem [thread:$0]  %s1, 128, %s36, [#allocation6]
    $region9: #{mlp_forward.1} parent=1 // pred_fallthru
      _
    // Predicated region
    $region10: #{mlp_forward.1} parent=1 // pred_check
      _
    $region11: #{mlp_forward.1} parent=1 // pred_check_branch
      %40 = sbr.rel (0) target = $region13
    $region12: #{mlp_forward.1} parent=1 // pred_region
      %s42 = ssub.s32 32, 32
      %43 = vsyncadd [#allocation6], %s42
      %s45 = sshll.u32 [#allocation7], 4
      %s46 = int_to_ptr.vmem [resolvable:$true] %s45
      %48 = dma.hbm_to_vmem [thread:$0]  %s2, 32, %s46, [#allocation6]
    $region13: #{mlp_forward.1} parent=1 // pred_fallthru
      _
    // Predicated region
    $region14: #{mlp_forward.1} parent=1 // pred_check
      _
    $region15: #{mlp_forward.1} parent=1 // pred_check_branch
      %50 = sbr.rel (0) target = $region17
    $region16: #{mlp_forward.1} parent=1 // pred_region
      %s52 = ssub.s32 4096, 4096
      %53 = vsyncadd [#allocation9], %s52
      %s54 = sshll.u32 [#allocation8], 4
      %s55 = int_to_ptr.vmem [resolvable:$true] %s54
      %60 = dma.hbm_to_vmem [thread:$0]  %s3, 4096, %s55, [#allocation9], 128, 128, 8
    $region17: #{mlp_forward.1} parent=1 // pred_fallthru
      _
    // Predicated region
    $region18: #{mlp_forward.1} parent=1 // pred_check
      _
    $region19: #{mlp_forward.1} parent=1 // pred_check_branch
      %62 = sbr.rel (0) target = $region21
    $region20: #{mlp_forward.1} parent=1 // pred_region
      %s64 = ssub.s32 32, 32
      %65 = vsyncadd [#allocation9], %s64
      %s67 = sshll.u32 [#allocation10], 4
      %s68 = int_to_ptr.vmem [resolvable:$true] %s67
      %70 = dma.hbm_to_vmem [thread:$0]  %s4, 32, %s68, [#allocation9]
    $region21: #{mlp_forward.1} parent=1 // pred_fallthru
      _
    // Predicated region
    $region22: #{mlp_forward.1} parent=1 // pred_check
      _
    $region23: #{mlp_forward.1} parent=1 // pred_check_branch
      %72 = sbr.rel (0) target = $region25
    $region24: #{mlp_forward.1} parent=1 // pred_region
      %s74 = ssub.s32 2048, 2048
      %75 = vsyncadd [#allocation12], %s74
      %s76 = sshll.u32 [#allocation11], 4
      %s77 = int_to_ptr.vmem [resolvable:$true] %s76
      %82 = dma.hbm_to_vmem [thread:$0]  %s5, 2048, %s77, [#allocation12], 64, 64, 4
    $region25: #{mlp_forward.1} parent=1 // pred_fallthru
      _
    // Predicated region
    $region26: #{mlp_forward.1} parent=1 // pred_check
      _
    $region27: #{mlp_forward.1} parent=1 // pred_check_branch
      %84 = sbr.rel (0) target = $region29
    $region28: #{mlp_forward.1} parent=1 // pred_region
      %s86 = ssub.s32 16, 16
      %87 = vsyncadd [#allocation12], %s86
      %s89 = sshll.u32 [#allocation13], 4
      %s90 = int_to_ptr.vmem [resolvable:$true] %s89
      %92 = dma.hbm_to_vmem [thread:$0]  %s6, 16, %s90, [#allocation12]
    $region29: #{mlp_forward.1} parent=1 // pred_fallthru
      _
    // Predicated region
    $region30: #{mlp_forward.1} parent=1 // pred_check
      _
    $region31: #{mlp_forward.1} parent=1 // pred_check_branch
      %94 = sbr.rel (0) target = $region33
    $region32: #{mlp_forward.1} parent=1 // pred_region
      %95 = dma.done [#allocation3], 128
    $region33: #{mlp_forward.1} parent=1 // pred_fallthru
      _
    // Predicated region
    $region34: #{mlp_forward.1} parent=1 // pred_check
      _
    $region35: #{mlp_forward.1} parent=1 // pred_check_branch
      %97 = sbr.rel (0) target = $region37
    $region36: #{mlp_forward.1} parent=1 // pred_region
      %98 = dma.done [#allocation6], 128
    $region37: #{mlp_forward.1} parent=1 // pred_fallthru
      _
    // Predicated region
    $region38: #{mlp_forward.1} parent=1 // pred_check
      _
    $region39: #{mlp_forward.1} parent=1 // pred_check_branch
      %100 = sbr.rel (0) target = $region41
    $region40: #{mlp_forward.1} parent=1 // pred_region
      %101 = dma.done [#allocation6], 32
    $region41: #{mlp_forward.1} parent=1 // pred_fallthru
      _
    // Predicated region
    $region42: #{mlp_forward.1} parent=1 // pred_check
      _
    $region43: #{mlp_forward.1} parent=1 // pred_check_branch
      %103 = sbr.rel (0) target = $region45
    $region44: #{mlp_forward.1} parent=1 // pred_region
      %104 = dma.done [#allocation9], 4096
    $region45: #{mlp_forward.1} parent=1 // pred_fallthru
      _
    // Predicated region
    $region46: #{mlp_forward.1} parent=1 // pred_check
      _
    $region47: #{mlp_forward.1} parent=1 // pred_check_branch
      %106 = sbr.rel (0) target = $region49
    $region48: #{mlp_forward.1} parent=1 // pred_region
      %107 = dma.done [#allocation9], 32
    $region49: #{mlp_forward.1} parent=1 // pred_fallthru
      _
    // Predicated region
    $region50: #{mlp_forward.1} parent=1 // pred_check
      _
    $region51: #{mlp_forward.1} parent=1 // pred_check_branch
      %109 = sbr.rel (0) target = $region53
    $region52: #{mlp_forward.1} parent=1 // pred_region
      %110 = dma.done [#allocation12], 2048
    $region53: #{mlp_forward.1} parent=1 // pred_fallthru
      _
    // Predicated region
    $region54: #{mlp_forward.1} parent=1 // pred_check
      _
    $region55: #{mlp_forward.1} parent=1 // pred_check_branch
      %112 = sbr.rel (0) target = $region57
    $region56: #{mlp_forward.1} parent=1 // pred_region
      %113 = dma.done [#allocation12], 16
    $region57: #{mlp_forward.1} parent=1 // pred_fallthru
      _
    %v115 = vld [vmem:[#allocation2] sm:$0xff]
    %v116 = vpack.c.bf16 %v115, %v115
    %v117 = vld [vmem:[#allocation5] sm:$0xff]
    %v118 = vld [vmem:[#allocation7] sm:$0x3]
    %v120 = vlaneseq
    %v121 = vshrl.u32 %v120, 7
    %v122 = vsub.s32 0, %v121
    %v123 = vrot.slane %v118, %v122
    %v124 = vlaneseq
    %v125 = vshrl.u32 %v124, 7
    %v126 = vsub.s32 1, %v125
    %v127 = vrot.slane %v118, %v126
    %v131 = vunpack.c.l.b16 %v117
    %v132 = vunpack.c.h.b16 %v117
    %v133 = vpack.c.b16 %v131, %v131
    %v134 = vpack.c.b16 %v132, %v132
    %vm135 = vcmask 64512
    %v137 = vsel %vm135, %v116, 0
    %vm139 = vcmask 1043456
    %v141 = vsel %vm139, %v133, 0
    %v144 = vsel %vm139, %v134, 0
    %146 = vmatprep.subr.bf16.mxu0 %v144
    %147 = vmatpush1.bf16.msra.mxu0 %v141
    %148 = vmatprep.subr.bf16.mxu0 0
    %149 = vmatpush1.bf16.msra.mxu0 0
    %150 = vmatprep.subr.bf16.mxu0 0
    %151 = vmatpush1.bf16.msra.mxu0 0
    %152 = vmatprep.subr.bf16.mxu0 0
    %153 = vmatpush1.bf16.msra.mxu0 0
    %154 = vmatprep.subr.bf16.mxu0 0
    %155 = vmatpush1.bf16.msra.mxu0 0
    %156 = vmatprep.subr.bf16.mxu0 0
    %157 = vmatpush1.bf16.msra.mxu0 0
    %158 = vmatprep.subr.bf16.mxu0 0
    %159 = vmatpush1.bf16.msra.mxu0 0
    %160 = vmatprep.subr.bf16.mxu0 0
    %161 = vmatpush1.bf16.msra.mxu0 0
    %162 = vmatprep.subr.bf16.mxu0 0
    %163 = vmatpush1.bf16.msra.mxu0 0
    %164 = vmatprep.subr.bf16.mxu0 0
    %165 = vmatpush1.bf16.msra.mxu0 0
    %166 = vmatprep.subr.bf16.mxu0 0
    %167 = vmatpush1.bf16.msra.mxu0 0
    %168 = vmatprep.subr.bf16.mxu0 0
    %169 = vmatpush1.bf16.msra.mxu0 0
    %170 = vmatprep.subr.bf16.mxu0 0
    %171 = vmatpush1.bf16.msra.mxu0 0
    %172 = vmatprep.subr.bf16.mxu0 0
    %173 = vmatpush1.bf16.msra.mxu0 0
    %174 = vmatprep.subr.bf16.mxu0 0
    %175 = vmatpush1.bf16.msra.mxu0 0
    %176 = vmatprep.subr.bf16.mxu0 0
    %177 = vmatpush1.bf16.msra.mxu0 0
    %178 = vmatprep.mubr.bf16.mxu0 0
    %179 = vmatmul.mubr.bf16.gmra.mrb[0].mxu0 %v137
    %v180 = vpop.f32.mrb[0].mxu0
    %v181 = vadd.f32 %v123, %v180
    %v182 = vpop.f32.mrb[0].mxu0
    %v183 = vadd.f32 %v127, %v182
    %v184 = vpop.f32.mrb[0].mxu0
    %v185 = vpop.f32.mrb[0].mxu0
    %186 = vdwg.mxu0
    %v187 = vmax.f32 %v181, 0.0
    %v188 = vmax.f32 %v183, 0.0
    %v189 = vpack.c.bf16 %v187, %v187
    %v190 = vpack.c.bf16 %v188, %v188
    %v191 = vld [vmem:[#allocation8] sm:$0xff]
    %v192 = vld [vmem:[#allocation8 + $0x8] sm:$0xff]
    %v193 = vld [vmem:[#allocation8 + $0x10] sm:$0xff]
    %v194 = vld [vmem:[#allocation8 + $0x18] sm:$0xff]
    %v195 = vld [vmem:[#allocation8 + $0x20] sm:$0xff]
    %v196 = vld [vmem:[#allocation8 + $0x28] sm:$0xff]
    %v197 = vld [vmem:[#allocation8 + $0x30] sm:$0xff]
    %v198 = vld [vmem:[#allocation8 + $0x38] sm:$0xff]
    %v199 = vld [vmem:[#allocation8 + $0x40] sm:$0xff]
    %v200 = vld [vmem:[#allocation8 + $0x48] sm:$0xff]
    %v201 = vld [vmem:[#allocation8 + $0x50] sm:$0xff]
    %v202 = vld [vmem:[#allocation8 + $0x58] sm:$0xff]
    %v203 = vld [vmem:[#allocation8 + $0x60] sm:$0xff]
    %v204 = vld [vmem:[#allocation8 + $0x68] sm:$0xff]
    %v205 = vld [vmem:[#allocation8 + $0x70] sm:$0xff]
    %v206 = vld [vmem:[#allocation8 + $0x78] sm:$0xff]
    %v207 = vld [vmem:[#allocation8 + $0x80] sm:$0xff]
    %v208 = vld [vmem:[#allocation8 + $0x88] sm:$0xff]
    %v209 = vld [vmem:[#allocation8 + $0x90] sm:$0xff]
    %v210 = vld [vmem:[#allocation8 + $0x98] sm:$0xff]
    %v211 = vld [vmem:[#allocation8 + $0xa0] sm:$0xff]
    %v212 = vld [vmem:[#allocation8 + $0xa8] sm:$0xff]
    %v213 = vld [vmem:[#allocation8 + $0xb0] sm:$0xff]
    %v214 = vld [vmem:[#allocation8 + $0xb8] sm:$0xff]
    %v215 = vld [vmem:[#allocation8 + $0xc0] sm:$0xff]
    %v216 = vld [vmem:[#allocation8 + $0xc8] sm:$0xff]
    %v217 = vld [vmem:[#allocation8 + $0xd0] sm:$0xff]
    %v218 = vld [vmem:[#allocation8 + $0xd8] sm:$0xff]
    %v219 = vld [vmem:[#allocation8 + $0xe0] sm:$0xff]
    %v220 = vld [vmem:[#allocation8 + $0xe8] sm:$0xff]
    %v221 = vld [vmem:[#allocation8 + $0xf0] sm:$0xff]
    %v222 = vld [vmem:[#allocation8 + $0xf8] sm:$0xff]
    %v223 = vld [vmem:[#allocation10] sm:$0x3]
    %v225 = vlaneseq
    %v226 = vshrl.u32 %v225, 7
    %v227 = vsub.s32 0, %v226
    %v228 = vrot.slane %v223, %v227
    %v229 = vlaneseq
    %v230 = vshrl.u32 %v229, 7
    %v231 = vsub.s32 1, %v230
    %v232 = vrot.slane %v223, %v231
    %v267 = vunpack.c.l.b16 %v191
    %v268 = vunpack.c.h.b16 %v191
    %v269 = vunpack.c.l.b16 %v192
    %v270 = vunpack.c.h.b16 %v192
    %v271 = vunpack.c.l.b16 %v193
    %v272 = vunpack.c.h.b16 %v193
    %v273 = vunpack.c.l.b16 %v194
    %v274 = vunpack.c.h.b16 %v194
    %v275 = vunpack.c.l.b16 %v195
    %v276 = vunpack.c.h.b16 %v195
    %v277 = vunpack.c.l.b16 %v196
    %v278 = vunpack.c.h.b16 %v196
    %v279 = vunpack.c.l.b16 %v197
    %v280 = vunpack.c.h.b16 %v197
    %v281 = vunpack.c.l.b16 %v198
    %v282 = vunpack.c.h.b16 %v198
    %v283 = vunpack.c.l.b16 %v199
    %v284 = vunpack.c.h.b16 %v199
    %v285 = vunpack.c.l.b16 %v200
    %v286 = vunpack.c.h.b16 %v200
    %v287 = vunpack.c.l.b16 %v201
    %v288 = vunpack.c.h.b16 %v201
    %v289 = vunpack.c.l.b16 %v202
    %v290 = vunpack.c.h.b16 %v202
    %v291 = vunpack.c.l.b16 %v203
    %v292 = vunpack.c.h.b16 %v203
    %v293 = vunpack.c.l.b16 %v204
    %v294 = vunpack.c.h.b16 %v204
    %v295 = vunpack.c.l.b16 %v205
    %v296 = vunpack.c.h.b16 %v205
    %v297 = vunpack.c.l.b16 %v206
    %v298 = vunpack.c.h.b16 %v206
    %v299 = vunpack.c.l.b16 %v207
    %v300 = vunpack.c.h.b16 %v207
    %v301 = vunpack.c.l.b16 %v208
    %v302 = vunpack.c.h.b16 %v208
    %v303 = vunpack.c.l.b16 %v209
    %v304 = vunpack.c.h.b16 %v209
    %v305 = vunpack.c.l.b16 %v210
    %v306 = vunpack.c.h.b16 %v210
    %v307 = vunpack.c.l.b16 %v211
    %v308 = vunpack.c.h.b16 %v211
    %v309 = vunpack.c.l.b16 %v212
    %v310 = vunpack.c.h.b16 %v212
    %v311 = vunpack.c.l.b16 %v213
    %v312 = vunpack.c.h.b16 %v213
    %v313 = vunpack.c.l.b16 %v214
    %v314 = vunpack.c.h.b16 %v214
    %v315 = vunpack.c.l.b16 %v215
    %v316 = vunpack.c.h.b16 %v215
    %v317 = vunpack.c.l.b16 %v216
    %v318 = vunpack.c.h.b16 %v216
    %v319 = vunpack.c.l.b16 %v217
    %v320 = vunpack.c.h.b16 %v217
    %v321 = vunpack.c.l.b16 %v218
    %v322 = vunpack.c.h.b16 %v218
    %v323 = vunpack.c.l.b16 %v219
    %v324 = vunpack.c.h.b16 %v219
    %v325 = vunpack.c.l.b16 %v220
    %v326 = vunpack.c.h.b16 %v220
    %v327 = vunpack.c.l.b16 %v221
    %v328 = vunpack.c.h.b16 %v221
    %v329 = vunpack.c.l.b16 %v222
    %v330 = vunpack.c.h.b16 %v222
    %v331 = vpack.c.b16 %v269, %v267
    %v332 = vpack.c.b16 %v270, %v268
    %v333 = vpack.c.b16 %v273, %v271
    %v334 = vpack.c.b16 %v274, %v272
    %v335 = vpack.c.b16 %v277, %v275
    %v336 = vpack.c.b16 %v278, %v276
    %v337 = vpack.c.b16 %v281, %v279
    %v338 = vpack.c.b16 %v282, %v280
    %v339 = vpack.c.b16 %v285, %v283
    %v340 = vpack.c.b16 %v286, %v284
    %v341 = vpack.c.b16 %v289, %v287
    %v342 = vpack.c.b16 %v290, %v288
    %v343 = vpack.c.b16 %v293, %v291
    %v344 = vpack.c.b16 %v294, %v292
    %v345 = vpack.c.b16 %v297, %v295
    %v346 = vpack.c.b16 %v298, %v296
    %v347 = vpack.c.b16 %v301, %v299
    %v348 = vpack.c.b16 %v302, %v300
    %v349 = vpack.c.b16 %v305, %v303
    %v350 = vpack.c.b16 %v306, %v304
    %v351 = vpack.c.b16 %v309, %v307
    %v352 = vpack.c.b16 %v310, %v308
    %v353 = vpack.c.b16 %v313, %v311
    %v354 = vpack.c.b16 %v314, %v312
    %v355 = vpack.c.b16 %v317, %v315
    %v356 = vpack.c.b16 %v318, %v316
    %v357 = vpack.c.b16 %v321, %v319
    %v358 = vpack.c.b16 %v322, %v320
    %v359 = vpack.c.b16 %v325, %v323
    %v360 = vpack.c.b16 %v326, %v324
    %v361 = vpack.c.b16 %v329, %v327
    %v362 = vpack.c.b16 %v330, %v328
    %395 = vmatprep.subr.bf16.mxu0 %v332
    %396 = vmatpush1.bf16.msra.mxu0 %v331
    %397 = vmatprep.subr.bf16.mxu0 %v334
    %398 = vmatpush1.bf16.msra.mxu0 %v333
    %399 = vmatprep.subr.bf16.mxu0 %v336
    %400 = vmatpush1.bf16.msra.mxu0 %v335
    %401 = vmatprep.subr.bf16.mxu0 %v338
    %402 = vmatpush1.bf16.msra.mxu0 %v337
    %403 = vmatprep.subr.bf16.mxu0 %v340
    %404 = vmatpush1.bf16.msra.mxu0 %v339
    %405 = vmatprep.subr.bf16.mxu0 %v342
    %406 = vmatpush1.bf16.msra.mxu0 %v341
    %407 = vmatprep.subr.bf16.mxu0 %v344
    %408 = vmatpush1.bf16.msra.mxu0 %v343
    %409 = vmatprep.subr.bf16.mxu0 %v346
    %410 = vmatpush1.bf16.msra.mxu0 %v345
    %411 = vmatprep.subr.bf16.mxu0 %v348
    %412 = vmatpush1.bf16.msra.mxu0 %v347
    %413 = vmatprep.subr.bf16.mxu0 %v350
    %414 = vmatpush1.bf16.msra.mxu0 %v349
    %415 = vmatprep.subr.bf16.mxu0 %v352
    %416 = vmatpush1.bf16.msra.mxu0 %v351
    %417 = vmatprep.subr.bf16.mxu0 %v354
    %418 = vmatpush1.bf16.msra.mxu0 %v353
    %419 = vmatprep.subr.bf16.mxu0 %v356
    %420 = vmatpush1.bf16.msra.mxu0 %v355
    %421 = vmatprep.subr.bf16.mxu0 %v358
    %422 = vmatpush1.bf16.msra.mxu0 %v357
    %423 = vmatprep.subr.bf16.mxu0 %v360
    %424 = vmatpush1.bf16.msra.mxu0 %v359
    %425 = vmatprep.subr.bf16.mxu0 %v362
    %426 = vmatpush1.bf16.msra.mxu0 %v361
    %427 = vmatprep.mubr.bf16.mxu0 %v190
    %428 = vmatmul.mubr.bf16.gmra.mrb[0].mxu0 %v189
    %v429 = vpop.f32.mrb[0].mxu0
    %v430 = vadd.f32 %v228, %v429
    %v431 = vpop.f32.mrb[0].mxu0
    %v432 = vadd.f32 %v232, %v431
    %v433 = vpop.f32.mrb[0].mxu0
    %v434 = vpop.f32.mrb[0].mxu0
    %435 = vdwg.mxu0
    %v436 = vmax.f32 %v430, 0.0
    %v437 = vmax.f32 %v432, 0.0
    %v438 = vpack.c.bf16 %v436, %v436
    %v439 = vpack.c.bf16 %v437, %v437
    %v440 = vld [vmem:[#allocation11] sm:$0xf]
    %v441 = vld [vmem:[#allocation11 + $0x4] sm:$0xf]
    %v442 = vld [vmem:[#allocation11 + $0x8] sm:$0xf]
    %v443 = vld [vmem:[#allocation11 + $0xc] sm:$0xf]
    %v444 = vld [vmem:[#allocation11 + $0x10] sm:$0xf]
    %v445 = vld [vmem:[#allocation11 + $0x14] sm:$0xf]
    %v446 = vld [vmem:[#allocation11 + $0x18] sm:$0xf]
    %v447 = vld [vmem:[#allocation11 + $0x1c] sm:$0xf]
    %v448 = vld [vmem:[#allocation11 + $0x20] sm:$0xf]
    %v449 = vld [vmem:[#allocation11 + $0x24] sm:$0xf]
    %v450 = vld [vmem:[#allocation11 + $0x28] sm:$0xf]
    %v451 = vld [vmem:[#allocation11 + $0x2c] sm:$0xf]
    %v452 = vld [vmem:[#allocation11 + $0x30] sm:$0xf]
    %v453 = vld [vmem:[#allocation11 + $0x34] sm:$0xf]
    %v454 = vld [vmem:[#allocation11 + $0x38] sm:$0xf]
    %v455 = vld [vmem:[#allocation11 + $0x3c] sm:$0xf]
    %v456 = vld [vmem:[#allocation11 + $0x40] sm:$0xf]
    %v457 = vld [vmem:[#allocation11 + $0x44] sm:$0xf]
    %v458 = vld [vmem:[#allocation11 + $0x48] sm:$0xf]
    %v459 = vld [vmem:[#allocation11 + $0x4c] sm:$0xf]
    %v460 = vld [vmem:[#allocation11 + $0x50] sm:$0xf]
    %v461 = vld [vmem:[#allocation11 + $0x54] sm:$0xf]
    %v462 = vld [vmem:[#allocation11 + $0x58] sm:$0xf]
    %v463 = vld [vmem:[#allocation11 + $0x5c] sm:$0xf]
    %v464 = vld [vmem:[#allocation11 + $0x60] sm:$0xf]
    %v465 = vld [vmem:[#allocation11 + $0x64] sm:$0xf]
    %v466 = vld [vmem:[#allocation11 + $0x68] sm:$0xf]
    %v467 = vld [vmem:[#allocation11 + $0x6c] sm:$0xf]
    %v468 = vld [vmem:[#allocation11 + $0x70] sm:$0xf]
    %v469 = vld [vmem:[#allocation11 + $0x74] sm:$0xf]
    %v470 = vld [vmem:[#allocation11 + $0x78] sm:$0xf]
    %v471 = vld [vmem:[#allocation11 + $0x7c] sm:$0xf]
    %v472 = vld [vmem:[#allocation13] sm:$0x1]
    %v474 = vlaneseq
    %v475 = vshrl.u32 %v474, 7
    %v476 = vsub.s32 0, %v475
    %v477 = vrot.slane %v472, %v476
    %v511 = vunpack.c.l.b16 %v440
    %v512 = vunpack.c.l.b16 %v441
    %v513 = vunpack.c.l.b16 %v442
    %v514 = vunpack.c.l.b16 %v443
    %v515 = vunpack.c.l.b16 %v444
    %v516 = vunpack.c.l.b16 %v445
    %v517 = vunpack.c.l.b16 %v446
    %v518 = vunpack.c.l.b16 %v447
    %v519 = vunpack.c.l.b16 %v448
    %v520 = vunpack.c.l.b16 %v449
    %v521 = vunpack.c.l.b16 %v450
    %v522 = vunpack.c.l.b16 %v451
    %v523 = vunpack.c.l.b16 %v452
    %v524 = vunpack.c.l.b16 %v453
    %v525 = vunpack.c.l.b16 %v454
    %v526 = vunpack.c.l.b16 %v455
    %v527 = vunpack.c.l.b16 %v456
    %v528 = vunpack.c.l.b16 %v457
    %v529 = vunpack.c.l.b16 %v458
    %v530 = vunpack.c.l.b16 %v459
    %v531 = vunpack.c.l.b16 %v460
    %v532 = vunpack.c.l.b16 %v461
    %v533 = vunpack.c.l.b16 %v462
    %v534 = vunpack.c.l.b16 %v463
    %v535 = vunpack.c.l.b16 %v464
    %v536 = vunpack.c.l.b16 %v465
    %v537 = vunpack.c.l.b16 %v466
    %v538 = vunpack.c.l.b16 %v467
    %v539 = vunpack.c.l.b16 %v468
    %v540 = vunpack.c.l.b16 %v469
    %v541 = vunpack.c.l.b16 %v470
    %v542 = vunpack.c.l.b16 %v471
    %v543 = vpack.c.b16 %v512, %v511
    %v544 = vpack.c.b16 %v514, %v513
    %v545 = vpack.c.b16 %v516, %v515
    %v546 = vpack.c.b16 %v518, %v517
    %v547 = vpack.c.b16 %v520, %v519
    %v548 = vpack.c.b16 %v522, %v521
    %v549 = vpack.c.b16 %v524, %v523
    %v550 = vpack.c.b16 %v526, %v525
    %v551 = vpack.c.b16 %v528, %v527
    %v552 = vpack.c.b16 %v530, %v529
    %v553 = vpack.c.b16 %v532, %v531
    %v554 = vpack.c.b16 %v534, %v533
    %v555 = vpack.c.b16 %v536, %v535
    %v556 = vpack.c.b16 %v538, %v537
    %v557 = vpack.c.b16 %v540, %v539
    %v558 = vpack.c.b16 %v542, %v541
    %575 = vmatprep.subr.bf16.mxu0 0
    %576 = vmatpush1.bf16.msra.mxu0 %v543
    %577 = vmatprep.subr.bf16.mxu0 0
    %578 = vmatpush1.bf16.msra.mxu0 %v544
    %579 = vmatprep.subr.bf16.mxu0 0
    %580 = vmatpush1.bf16.msra.mxu0 %v545
    %581 = vmatprep.subr.bf16.mxu0 0
    %582 = vmatpush1.bf16.msra.mxu0 %v546
    %583 = vmatprep.subr.bf16.mxu0 0
    %584 = vmatpush1.bf16.msra.mxu0 %v547
    %585 = vmatprep.subr.bf16.mxu0 0
    %586 = vmatpush1.bf16.msra.mxu0 %v548
    %587 = vmatprep.subr.bf16.mxu0 0
    %588 = vmatpush1.bf16.msra.mxu0 %v549
    %589 = vmatprep.subr.bf16.mxu0 0
    %590 = vmatpush1.bf16.msra.mxu0 %v550
    %591 = vmatprep.subr.bf16.mxu0 0
    %592 = vmatpush1.bf16.msra.mxu0 %v551
    %593 = vmatprep.subr.bf16.mxu0 0
    %594 = vmatpush1.bf16.msra.mxu0 %v552
    %595 = vmatprep.subr.bf16.mxu0 0
    %596 = vmatpush1.bf16.msra.mxu0 %v553
    %597 = vmatprep.subr.bf16.mxu0 0
    %598 = vmatpush1.bf16.msra.mxu0 %v554
    %599 = vmatprep.subr.bf16.mxu0 0
    %600 = vmatpush1.bf16.msra.mxu0 %v555
    %601 = vmatprep.subr.bf16.mxu0 0
    %602 = vmatpush1.bf16.msra.mxu0 %v556
    %603 = vmatprep.subr.bf16.mxu0 0
    %604 = vmatpush1.bf16.msra.mxu0 %v557
    %605 = vmatprep.subr.bf16.mxu0 0
    %606 = vmatpush1.bf16.msra.mxu0 %v558
    %607 = vmatprep.mubr.bf16.mxu0 %v439
    %608 = vmatmul.mubr.bf16.gmra.mrb[0].mxu0 %v438
    %v609 = vpop.f32.mrb[0].mxu0
    %v610 = vadd.f32 %v477, %v609
    %v611 = vpop.f32.mrb[0].mxu0
    %v612 = vpop.f32.mrb[0].mxu0
    %v613 = vpop.f32.mrb[0].mxu0
    %614 = vdwg.mxu0
    %vm615 = vcmask 31744
    %616 = vst.msk [vmem:[#allocation14] sm:$0xff] %vm615, %v610
    // Predicated region
    $region58: #{mlp_forward.1} parent=1 // pred_check
      _
    $region59: #{mlp_forward.1} parent=1 // pred_check_branch
      %618 = sbr.rel (0) target = $region61
    $region60: #{mlp_forward.1} parent=1 // pred_region
      %s620 = ssub.s32 128, 32
      %621 = vsyncadd [#allocation4], %s620
      %s622 = sshll.u32 [#allocation14], 4
      %s623 = int_to_ptr.vmem [resolvable:$true] %s622
      %628 = dma.vmem_to_hbm [thread:$0]  %s623, 32, %s7, [#allocation4], 32, 32, 2
    $region61: #{mlp_forward.1} parent=1 // pred_fallthru
      _
    // Predicated region
    $region62: #{mlp_forward.1} parent=1 // pred_check
      _
    $region63: #{mlp_forward.1} parent=1 // pred_check_branch
      %630 = sbr.rel (0) target = $region65
    $region64: #{mlp_forward.1} parent=1 // pred_region
      %631 = dma.done [#allocation4], 128
    $region65: #{mlp_forward.1} parent=1 // pred_fallthru
      _
    %632 = vsyncpa [#allocation3], 1
    %633 = vsyncpa [#allocation6], 1
    %634 = vsyncpa [#allocation9], 1
    %635 = vsyncpa [#allocation12], 1
    %636 = vsyncpa [#allocation4], 1

</llo_original>
